<compile_context>
chip_gen: v6e
topology: v6e:2x2x1
jax: 0.10.0
libtpu: 0.0.40
codegen_flags: <defaults>
</compile_context>

<pallas_src>
import functools

import jax
import jax.numpy as jnp
from jax.experimental import pallas as pl
from jax.experimental.pallas import tpu as pltpu


def value_net_kernel(xT_ref, p_ref, o_ref, *, state_dim):
    S = state_dim
    H = p_ref.shape[0]
    TB = xT_ref.shape[1]

    xT = xT_ref[...]            # [S, TB] f32, batch on lanes (lane-dense)
    p = p_ref[...]              # [H, S+3] packed weights (resident every step)

    b1 = p[:, S:S + 1]          # [H, 1]
    w2 = p[:, S + 1:S + 2]      # [H, 1]  fc2 weight column
    b2 = p[0:1, S + 2:S + 3]    # [1, 1]  fc2 bias (replicated down the column)

    # fc1 + bias, transposed: h^T[h, b] = b1[h] + sum_s w1[s, h] * x[b, s].
    # K = S is tiny (4) -> S broadcast multiply-accumulates on the VPU; avoids
    # MXU fill/drain for a K=4 matmul.
    h = jnp.broadcast_to(b1, (H, TB))
    for s in range(S):          # S is a compile-time constant
        h = h + p[:, s:s + 1] * xT[s:s + 1, :]
    h = jnp.maximum(h, 0.0)     # ReLU

    # fc2 (H -> 1): multiply by the w2 column and reduce over the sublane (H)
    # axis (XLU). Result stays lane-dense [1, TB] -> unmasked stores.
    y = jnp.sum(h * w2, axis=0, keepdims=True) + b2
    o_ref[...] = y.astype(o_ref.dtype)


def pack_params(w1, b1, w2, b2):
    """Pack all ValueNet parameters into one [H, S+3] f32 operand.

    Columns: [0:S] = w1^T (each column is w1[s, :]), [S] = b1, [S+1] = w2,
    [S+2] = b2 replicated. Call ONCE per weight update, not per forward.
    """
    S, H = w1.shape
    b2_col = jnp.full((H, 1), jnp.asarray(b2, jnp.float32).reshape(()), jnp.float32)
    return jnp.concatenate(
        [
            w1.T.astype(jnp.float32),                 # [H, S]
            jnp.reshape(b1, (H, 1)).astype(jnp.float32),
            jnp.reshape(w2, (H, 1)).astype(jnp.float32),
            b2_col,
        ],
        axis=1,
    )                                                 # [H, S+3]


def value_net(x, params, *, tile_b=1024):
    """y = ReLU(x @ w1 + b1) @ w2 + b2   (ValueNet.forward)

    x: [B, S] activations; params: [H, S+3] from pack_params().
    """
    B, S = x.shape
    H = params.shape[0]
    assert params.shape[1] == S + 3

    xT = x.T.astype(jnp.float32)                      # [S, B]: batch on lanes
    kernel = functools.partial(value_net_kernel, state_dim=S)
    out_shape = jax.ShapeDtypeStruct((1, B), jnp.float32)

    if B <= 128:
        # Tiny batch: one gridless invocation, everything fully resident.
        yT = pl.pallas_call(
            kernel,
            out_shape=out_shape,
            in_specs=[
                pl.BlockSpec(memory_space=pltpu.MemorySpace.VMEM),
                pl.BlockSpec(memory_space=pltpu.MemorySpace.VMEM),
            ],
            out_specs=pl.BlockSpec(memory_space=pltpu.MemorySpace.VMEM),
        )(xT, params)
    else:
        # Tiled over the batch (lane) axis. Tile ~= B/2 rounded up to 128 lanes,
        # capped at tile_b, so there are always >= 2 blocks (v7x megacore) while
        # staying large enough to amortize per-grid-step overhead.
        tb = min(tile_b, 128 * pl.cdiv(B, 256))
        grid = (pl.cdiv(B, tb),)                      # cdiv grid; tail block masked
        yT = pl.pallas_call(
            kernel,
            out_shape=out_shape,
            grid=grid,
            in_specs=[
                pl.BlockSpec((S, tb), lambda i: (0, i)),        # lane-dense x tile
                pl.BlockSpec((H, S + 3), lambda i: (0, 0)),     # weights stay resident
            ],
            out_specs=pl.BlockSpec((1, tb), lambda i: (0, i)),  # lane-dense output
            compiler_params=pltpu.CompilerParams(
                dimension_semantics=("parallel",)
            ),
        )(xT, params)

    return yT.reshape(B, 1)   # (1, B) -> (B, 1): layout-preserving (free) reshape


def init_params(key, state_dim, hidden_dim):
    # Mimic torch.nn.Linear default init: U(-1/sqrt(fan_in), +1/sqrt(fan_in)).
    k1, k2, k3, k4 = jax.random.split(key, 4)
    bound1 = 1.0 / jnp.sqrt(jnp.float32(state_dim))
    bound2 = 1.0 / jnp.sqrt(jnp.float32(hidden_dim))
    w1 = jax.random.uniform(k1, (state_dim, hidden_dim), jnp.float32, -bound1, bound1)
    b1 = jax.random.uniform(k2, (hidden_dim,), jnp.float32, -bound1, bound1)
    w2 = jax.random.uniform(k3, (hidden_dim, 1), jnp.float32, -bound2, bound2)
    b2 = jax.random.uniform(k4, (), jnp.float32, -bound2, bound2)
    return w1, b1, w2, b2


def reference(x, w1, b1, w2, b2):
    hp = jax.lax.Precision.HIGHEST
    h = jnp.maximum(jnp.dot(x.astype(jnp.float32), w1, precision=hp) + b1, 0.0)
    return jnp.dot(h, w2, precision=hp) + b2


if __name__ == "__main__":
    state_dim = 4      # CartPole-v0 observation dim
    hidden_dim = 128

    key = jax.random.PRNGKey(0)
    kp, ka, kb, kc = jax.random.split(key, 4)
    w1, b1, w2, b2 = init_params(kp, state_dim, hidden_dim)
    params = pack_params(w1, b1, w2, b2)   # packed once, reused across forwards

    # Small batch -> gridless fully-resident path.
    x_small = jax.random.normal(ka, (8, state_dim), jnp.float32)
    out_small = jax.block_until_ready(value_net(x_small, params))
    assert out_small.shape == (8, 1)
    assert jnp.allclose(out_small, reference(x_small, w1, b1, w2, b2),
                        atol=1e-4, rtol=1e-4)

    # Larger batch -> tiled path: 2 blocks of 256 lanes, "parallel" batch axis.
    x_big = jax.random.normal(kb, (512, state_dim), jnp.float32)
    out_big = jax.block_until_ready(value_net(x_big, params))
    assert out_big.shape == (512, 1)
    assert jnp.allclose(out_big, reference(x_big, w1, b1, w2, b2),
                        atol=1e-4, rtol=1e-4)

    # Non-multiple batch -> cdiv grid with masked tail block (no gridless fallback).
    x_odd = jax.random.normal(kc, (700, state_dim), jnp.float32)
    out_odd = jax.block_until_ready(value_net(x_odd, params))
    assert out_odd.shape == (700, 1)
    assert jnp.allclose(out_odd, reference(x_odd, w1, b1, w2, b2),
                        atol=1e-4, rtol=1e-4)

    print("KERNEL_OK")
</pallas_src>

<mosaic_0001>
module attributes {stable_mosaic.version = 11 : i64} {
  func.func @value_net_kernel(%arg0: memref<4x8xf32, #tpu.memory_space<vmem>>, %arg1: memref<128x7xf32, #tpu.memory_space<vmem>>, %arg2: memref<1x8xf32, #tpu.memory_space<vmem>>) attributes {dimension_semantics = [], scalar_prefetch = 0 : i64, scratch_operands = 0 : i64, tpu.core_type = #tpu.core_type<tc>} {
    %c0 = arith.constant 0 : index
    %c0_0 = arith.constant 0 : index
    %0 = vector.load %arg0[%c0, %c0_0] : memref<4x8xf32, #tpu.memory_space<vmem>>, vector<4x8xf32>
    %c0_1 = arith.constant 0 : index
    %c0_2 = arith.constant 0 : index
    %1 = vector.load %arg1[%c0_1, %c0_2] : memref<128x7xf32, #tpu.memory_space<vmem>>, vector<128x7xf32>
    %2 = vector.extract_strided_slice %1 {offsets = [0, 4], sizes = [128, 1], strides = [1, 1]} : vector<128x7xf32> to vector<128x1xf32>
    %3 = vector.extract_strided_slice %1 {offsets = [0, 5], sizes = [128, 1], strides = [1, 1]} : vector<128x7xf32> to vector<128x1xf32>
    %4 = vector.extract_strided_slice %1 {offsets = [0, 6], sizes = [1, 1], strides = [1, 1]} : vector<128x7xf32> to vector<1x1xf32>
    %5 = vector.shape_cast %2 : vector<128x1xf32> to vector<128x1xf32>
    %6 = vector.broadcast %5 : vector<128x1xf32> to vector<128x8xf32>
    %7 = vector.extract_strided_slice %1 {offsets = [0, 0], sizes = [128, 1], strides = [1, 1]} : vector<128x7xf32> to vector<128x1xf32>
    %8 = vector.extract_strided_slice %0 {offsets = [0, 0], sizes = [1, 8], strides = [1, 1]} : vector<4x8xf32> to vector<1x8xf32>
    %9 = vector.broadcast %7 : vector<128x1xf32> to vector<128x8xf32>
    %10 = vector.broadcast %8 : vector<1x8xf32> to vector<128x8xf32>
    %11 = arith.mulf %9, %10 : vector<128x8xf32>
    %12 = arith.addf %6, %11 : vector<128x8xf32>
    %13 = vector.extract_strided_slice %1 {offsets = [0, 1], sizes = [128, 1], strides = [1, 1]} : vector<128x7xf32> to vector<128x1xf32>
    %14 = vector.extract_strided_slice %0 {offsets = [1, 0], sizes = [1, 8], strides = [1, 1]} : vector<4x8xf32> to vector<1x8xf32>
    %15 = vector.broadcast %13 : vector<128x1xf32> to vector<128x8xf32>
    %16 = vector.broadcast %14 : vector<1x8xf32> to vector<128x8xf32>
    %17 = arith.mulf %15, %16 : vector<128x8xf32>
    %18 = arith.addf %12, %17 : vector<128x8xf32>
    %19 = vector.extract_strided_slice %1 {offsets = [0, 2], sizes = [128, 1], strides = [1, 1]} : vector<128x7xf32> to vector<128x1xf32>
    %20 = vector.extract_strided_slice %0 {offsets = [2, 0], sizes = [1, 8], strides = [1, 1]} : vector<4x8xf32> to vector<1x8xf32>
    %21 = vector.broadcast %19 : vector<128x1xf32> to vector<128x8xf32>
    %22 = vector.broadcast %20 : vector<1x8xf32> to vector<128x8xf32>
    %23 = arith.mulf %21, %22 : vector<128x8xf32>
    %24 = arith.addf %18, %23 : vector<128x8xf32>
    %25 = vector.extract_strided_slice %1 {offsets = [0, 3], sizes = [128, 1], strides = [1, 1]} : vector<128x7xf32> to vector<128x1xf32>
    %26 = vector.extract_strided_slice %0 {offsets = [3, 0], sizes = [1, 8], strides = [1, 1]} : vector<4x8xf32> to vector<1x8xf32>
    %27 = vector.broadcast %25 : vector<128x1xf32> to vector<128x8xf32>
    %28 = vector.broadcast %26 : vector<1x8xf32> to vector<128x8xf32>
    %29 = arith.mulf %27, %28 : vector<128x8xf32>
    %30 = arith.addf %24, %29 : vector<128x8xf32>
    %cst = arith.constant 0.000000e+00 : f32
    %31 = vector.broadcast %cst : f32 to vector<128x8xf32>
    %32 = arith.maximumf %30, %31 : vector<128x8xf32>
    %33 = vector.broadcast %3 : vector<128x1xf32> to vector<128x8xf32>
    %34 = arith.mulf %32, %33 : vector<128x8xf32>
    %cst_3 = arith.constant dense<0.000000e+00> : vector<8xf32>
    %35 = vector.multi_reduction <add>, %34, %cst_3 [0] : vector<128x8xf32> to vector<8xf32>
    %36 = vector.shape_cast %35 : vector<8xf32> to vector<1x8xf32>
    %37 = vector.broadcast %4 : vector<1x1xf32> to vector<1x8xf32>
    %38 = arith.addf %36, %37 : vector<1x8xf32>
    %c0_4 = arith.constant 0 : index
    %c0_5 = arith.constant 0 : index
    %39 = vector.load %arg2[%c0_4, %c0_5] : memref<1x8xf32, #tpu.memory_space<vmem>>, vector<1x8xf32>
    tpu.vector_store %arg2[%c0_4, %c0_5], %38 {strides = array<i32>} : memref<1x8xf32, #tpu.memory_space<vmem>>, vector<1x8xf32>,
    return
  }
}

</mosaic_0001>

<llo_original>
// kernel: tpu_custom_call.1
$region0: #{tpu_custom_call.1}
  #allocation0 [shape = 'u32[]', space=smem, size = 0x4, offset = 0x4, fixed_abs, tag = 'smem constant byte address 0x4 - core index']
  #allocation1 [shape = 'u32[144,128]{1,0:T(1,128)}', space=vmem, size = 0x12000, scoped, tag = 'internal scratch']
  %s0 = inlined_call_operand.vmem [shape: f32[4,8], index: 0, kind: input, shape index: {}]
  %s1 = inlined_call_operand.vmem [shape: f32[128,7], index: 1, kind: input, shape index: {}]
  %s2 = inlined_call_operand.hbm [shape: f32[1,8], index: 2, kind: output, shape index: {}]
  %s3 = sld [smem:[#allocation0]]
  $region18: #{tpu_custom_call.1} parent=0
    _
  %s5 = ssub.s32 1, %s3
  %s6 = scalar_select 0, %s5, %s3
  $region1: #{tpu_custom_call.1} parent=0
    #allocation2 [shape = 'u8[512]{0}', space=vmem, size = 0x400, scoped, tag = 'output window, operand 0, single buffered']
    #allocation3 [shape = 's32[1]{0}', space=sflag, size = 0x4, scoped, tag = 'scoped memory for tpu_custom_call.1']
    %7 = vsyncpa [#allocation3], 0
    // Predicated region
    $region2: #{tpu_custom_call.1} parent=1 // pred_check
      _
    $region3: #{tpu_custom_call.1} parent=1 // pred_check_branch
      %9 = sbr.rel (0) target = $region5
    $region4: #{tpu_custom_call.1} parent=1 // pred_region
      _
    $region5: #{tpu_custom_call.1} parent=1 // pred_fallthru
      _
    // Predicated region
    $region6: #{tpu_custom_call.1} parent=1 // pred_check
      _
    $region7: #{tpu_custom_call.1} parent=1 // pred_check_branch
      %11 = sbr.rel (0) target = $region9
    $region8: #{tpu_custom_call.1} parent=1 // pred_region
      _
    $region9: #{tpu_custom_call.1} parent=1 // pred_fallthru
      _
    %v12 = vld [vmem:[%s0] sm:$0xf]
    %v13 = vld [vmem:[%s1] sm:$0xff]
    %v14 = vld [vmem:[%s1 + $0x8] sm:$0xff]
    %v15 = vld [vmem:[%s1 + $0x10] sm:$0xff]
    %v16 = vld [vmem:[%s1 + $0x18] sm:$0xff]
    %v17 = vld [vmem:[%s1 + $0x20] sm:$0xff]
    %v18 = vld [vmem:[%s1 + $0x28] sm:$0xff]
    %v19 = vld [vmem:[%s1 + $0x30] sm:$0xff]
    %v20 = vld [vmem:[%s1 + $0x38] sm:$0xff]
    %v21 = vld [vmem:[%s1 + $0x40] sm:$0xff]
    %v22 = vld [vmem:[%s1 + $0x48] sm:$0xff]
    %v23 = vld [vmem:[%s1 + $0x50] sm:$0xff]
    %v24 = vld [vmem:[%s1 + $0x58] sm:$0xff]
    %v25 = vld [vmem:[%s1 + $0x60] sm:$0xff]
    %v26 = vld [vmem:[%s1 + $0x68] sm:$0xff]
    %v27 = vld [vmem:[%s1 + $0x70] sm:$0xff]
    %v28 = vld [vmem:[%s1 + $0x78] sm:$0xff]
    %30 = vset.pattern.permute.xlu0 4
    %31 = vperm.xlu0 %30, %v13
    %v32 = vpop.permute.xlu0 %31
    %35 = vset.pattern.permute.xlu0 4
    %36 = vperm.xlu0 %35, %v14
    %v37 = vpop.permute.xlu0 %36
    %40 = vset.pattern.permute.xlu0 4
    %41 = vperm.xlu0 %40, %v15
    %v42 = vpop.permute.xlu0 %41
    %45 = vset.pattern.permute.xlu0 4
    %46 = vperm.xlu0 %45, %v16
    %v47 = vpop.permute.xlu0 %46
    %50 = vset.pattern.permute.xlu0 4
    %51 = vperm.xlu0 %50, %v17
    %v52 = vpop.permute.xlu0 %51
    %55 = vset.pattern.permute.xlu0 4
    %56 = vperm.xlu0 %55, %v18
    %v57 = vpop.permute.xlu0 %56
    %60 = vset.pattern.permute.xlu0 4
    %61 = vperm.xlu0 %60, %v19
    %v62 = vpop.permute.xlu0 %61
    %65 = vset.pattern.permute.xlu0 4
    %66 = vperm.xlu0 %65, %v20
    %v67 = vpop.permute.xlu0 %66
    %70 = vset.pattern.permute.xlu0 4
    %71 = vperm.xlu0 %70, %v21
    %v72 = vpop.permute.xlu0 %71
    %75 = vset.pattern.permute.xlu0 4
    %76 = vperm.xlu0 %75, %v22
    %v77 = vpop.permute.xlu0 %76
    %80 = vset.pattern.permute.xlu0 4
    %81 = vperm.xlu0 %80, %v23
    %v82 = vpop.permute.xlu0 %81
    %85 = vset.pattern.permute.xlu0 4
    %86 = vperm.xlu0 %85, %v24
    %v87 = vpop.permute.xlu0 %86
    %90 = vset.pattern.permute.xlu0 4
    %91 = vperm.xlu0 %90, %v25
    %v92 = vpop.permute.xlu0 %91
    %95 = vset.pattern.permute.xlu0 4
    %96 = vperm.xlu0 %95, %v26
    %v97 = vpop.permute.xlu0 %96
    %100 = vset.pattern.permute.xlu0 4
    %101 = vperm.xlu0 %100, %v27
    %v102 = vpop.permute.xlu0 %101
    %105 = vset.pattern.permute.xlu0 4
    %106 = vperm.xlu0 %105, %v28
    %v107 = vpop.permute.xlu0 %106
    %109 = vset.pattern.permute.xlu0 0
    %110 = vperm.xlu0 %109, %v13
    %v111 = vpop.permute.xlu0 %110
    %113 = vset.pattern.permute.xlu0 0
    %114 = vperm.xlu0 %113, %v14
    %v115 = vpop.permute.xlu0 %114
    %117 = vset.pattern.permute.xlu0 0
    %118 = vperm.xlu0 %117, %v15
    %v119 = vpop.permute.xlu0 %118
    %121 = vset.pattern.permute.xlu0 0
    %122 = vperm.xlu0 %121, %v16
    %v123 = vpop.permute.xlu0 %122
    %125 = vset.pattern.permute.xlu0 0
    %126 = vperm.xlu0 %125, %v17
    %v127 = vpop.permute.xlu0 %126
    %129 = vset.pattern.permute.xlu0 0
    %130 = vperm.xlu0 %129, %v18
    %v131 = vpop.permute.xlu0 %130
    %133 = vset.pattern.permute.xlu0 0
    %134 = vperm.xlu0 %133, %v19
    %v135 = vpop.permute.xlu0 %134
    %137 = vset.pattern.permute.xlu0 0
    %138 = vperm.xlu0 %137, %v20
    %v139 = vpop.permute.xlu0 %138
    %141 = vset.pattern.permute.xlu0 0
    %142 = vperm.xlu0 %141, %v21
    %v143 = vpop.permute.xlu0 %142
    %145 = vset.pattern.permute.xlu0 0
    %146 = vperm.xlu0 %145, %v22
    %v147 = vpop.permute.xlu0 %146
    %149 = vset.pattern.permute.xlu0 0
    %150 = vperm.xlu0 %149, %v23
    %v151 = vpop.permute.xlu0 %150
    %153 = vset.pattern.permute.xlu0 0
    %154 = vperm.xlu0 %153, %v24
    %v155 = vpop.permute.xlu0 %154
    %157 = vset.pattern.permute.xlu0 0
    %158 = vperm.xlu0 %157, %v25
    %v159 = vpop.permute.xlu0 %158
    %161 = vset.pattern.permute.xlu0 0
    %162 = vperm.xlu0 %161, %v26
    %v163 = vpop.permute.xlu0 %162
    %165 = vset.pattern.permute.xlu0 0
    %166 = vperm.xlu0 %165, %v27
    %v167 = vpop.permute.xlu0 %166
    %169 = vset.pattern.permute.xlu0 0
    %170 = vperm.xlu0 %169, %v28
    %v171 = vpop.permute.xlu0 %170
    %v173 = vlaneseq
    %v174 = vshrl.u32 %v173, 7
    %v175 = vsub.s32 0, %v174
    %v176 = vrot.slane %v12, %v175
    %v177 = vmul.f32 %v111, %v176
    %v178 = vmul.f32 %v115, %v176
    %v179 = vmul.f32 %v119, %v176
    %v180 = vmul.f32 %v123, %v176
    %v181 = vmul.f32 %v127, %v176
    %v182 = vmul.f32 %v131, %v176
    %v183 = vmul.f32 %v135, %v176
    %v184 = vmul.f32 %v139, %v176
    %v185 = vmul.f32 %v143, %v176
    %v186 = vmul.f32 %v147, %v176
    %v187 = vmul.f32 %v151, %v176
    %v188 = vmul.f32 %v155, %v176
    %v189 = vmul.f32 %v159, %v176
    %v190 = vmul.f32 %v163, %v176
    %v191 = vmul.f32 %v167, %v176
    %v192 = vmul.f32 %v171, %v176
    %v193 = vadd.f32 %v32, %v177
    %v194 = vadd.f32 %v37, %v178
    %v195 = vadd.f32 %v42, %v179
    %v196 = vadd.f32 %v47, %v180
    %v197 = vadd.f32 %v52, %v181
    %v198 = vadd.f32 %v57, %v182
    %v199 = vadd.f32 %v62, %v183
    %v200 = vadd.f32 %v67, %v184
    %v201 = vadd.f32 %v72, %v185
    %v202 = vadd.f32 %v77, %v186
    %v203 = vadd.f32 %v82, %v187
    %v204 = vadd.f32 %v87, %v188
    %v205 = vadd.f32 %v92, %v189
    %v206 = vadd.f32 %v97, %v190
    %v207 = vadd.f32 %v102, %v191
    %v208 = vadd.f32 %v107, %v192
    %209 = vset.pattern.permute.xlu0 1
    %210 = vperm.xlu0 %209, %v13
    %v211 = vpop.permute.xlu0 %210
    %213 = vset.pattern.permute.xlu0 1
    %214 = vperm.xlu0 %213, %v14
    %v215 = vpop.permute.xlu0 %214
    %217 = vset.pattern.permute.xlu0 1
    %218 = vperm.xlu0 %217, %v15
    %v219 = vpop.permute.xlu0 %218
    %221 = vset.pattern.permute.xlu0 1
    %222 = vperm.xlu0 %221, %v16
    %v223 = vpop.permute.xlu0 %222
    %225 = vset.pattern.permute.xlu0 1
    %226 = vperm.xlu0 %225, %v17
    %v227 = vpop.permute.xlu0 %226
    %229 = vset.pattern.permute.xlu0 1
    %230 = vperm.xlu0 %229, %v18
    %v231 = vpop.permute.xlu0 %230
    %233 = vset.pattern.permute.xlu0 1
    %234 = vperm.xlu0 %233, %v19
    %v235 = vpop.permute.xlu0 %234
    %237 = vset.pattern.permute.xlu0 1
    %238 = vperm.xlu0 %237, %v20
    %v239 = vpop.permute.xlu0 %238
    %241 = vset.pattern.permute.xlu0 1
    %242 = vperm.xlu0 %241, %v21
    %v243 = vpop.permute.xlu0 %242
    %245 = vset.pattern.permute.xlu0 1
    %246 = vperm.xlu0 %245, %v22
    %v247 = vpop.permute.xlu0 %246
    %249 = vset.pattern.permute.xlu0 1
    %250 = vperm.xlu0 %249, %v23
    %v251 = vpop.permute.xlu0 %250
    %253 = vset.pattern.permute.xlu0 1
    %254 = vperm.xlu0 %253, %v24
    %v255 = vpop.permute.xlu0 %254
    %257 = vset.pattern.permute.xlu0 1
    %258 = vperm.xlu0 %257, %v25
    %v259 = vpop.permute.xlu0 %258
    %261 = vset.pattern.permute.xlu0 1
    %262 = vperm.xlu0 %261, %v26
    %v263 = vpop.permute.xlu0 %262
    %265 = vset.pattern.permute.xlu0 1
    %266 = vperm.xlu0 %265, %v27
    %v267 = vpop.permute.xlu0 %266
    %269 = vset.pattern.permute.xlu0 1
    %270 = vperm.xlu0 %269, %v28
    %v271 = vpop.permute.xlu0 %270
    %v273 = vlaneseq
    %v274 = vshrl.u32 %v273, 7
    %v275 = vsub.s32 1, %v274
    %v276 = vrot.slane %v12, %v275
    %v277 = vmul.f32 %v211, %v276
    %v278 = vmul.f32 %v215, %v276
    %v279 = vmul.f32 %v219, %v276
    %v280 = vmul.f32 %v223, %v276
    %v281 = vmul.f32 %v227, %v276
    %v282 = vmul.f32 %v231, %v276
    %v283 = vmul.f32 %v235, %v276
    %v284 = vmul.f32 %v239, %v276
    %v285 = vmul.f32 %v243, %v276
    %v286 = vmul.f32 %v247, %v276
    %v287 = vmul.f32 %v251, %v276
    %v288 = vmul.f32 %v255, %v276
    %v289 = vmul.f32 %v259, %v276
    %v290 = vmul.f32 %v263, %v276
    %v291 = vmul.f32 %v267, %v276
    %v292 = vmul.f32 %v271, %v276
    %v293 = vadd.f32 %v193, %v277
    %v294 = vadd.f32 %v194, %v278
    %v295 = vadd.f32 %v195, %v279
    %v296 = vadd.f32 %v196, %v280
    %v297 = vadd.f32 %v197, %v281
    %v298 = vadd.f32 %v198, %v282
    %v299 = vadd.f32 %v199, %v283
    %v300 = vadd.f32 %v200, %v284
    %v301 = vadd.f32 %v201, %v285
    %v302 = vadd.f32 %v202, %v286
    %v303 = vadd.f32 %v203, %v287
    %v304 = vadd.f32 %v204, %v288
    %v305 = vadd.f32 %v205, %v289
    %v306 = vadd.f32 %v206, %v290
    %v307 = vadd.f32 %v207, %v291
    %v308 = vadd.f32 %v208, %v292
    %309 = vset.pattern.permute.xlu0 2
    %310 = vperm.xlu0 %309, %v13
    %v311 = vpop.permute.xlu0 %310
    %313 = vset.pattern.permute.xlu0 2
    %314 = vperm.xlu0 %313, %v14
    %v315 = vpop.permute.xlu0 %314
    %317 = vset.pattern.permute.xlu0 2
    %318 = vperm.xlu0 %317, %v15
    %v319 = vpop.permute.xlu0 %318
    %321 = vset.pattern.permute.xlu0 2
    %322 = vperm.xlu0 %321, %v16
    %v323 = vpop.permute.xlu0 %322
    %325 = vset.pattern.permute.xlu0 2
    %326 = vperm.xlu0 %325, %v17
    %v327 = vpop.permute.xlu0 %326
    %329 = vset.pattern.permute.xlu0 2
    %330 = vperm.xlu0 %329, %v18
    %v331 = vpop.permute.xlu0 %330
    %333 = vset.pattern.permute.xlu0 2
    %334 = vperm.xlu0 %333, %v19
    %v335 = vpop.permute.xlu0 %334
    %337 = vset.pattern.permute.xlu0 2
    %338 = vperm.xlu0 %337, %v20
    %v339 = vpop.permute.xlu0 %338
    %341 = vset.pattern.permute.xlu0 2
    %342 = vperm.xlu0 %341, %v21
    %v343 = vpop.permute.xlu0 %342
    %345 = vset.pattern.permute.xlu0 2
    %346 = vperm.xlu0 %345, %v22
    %v347 = vpop.permute.xlu0 %346
    %349 = vset.pattern.permute.xlu0 2
    %350 = vperm.xlu0 %349, %v23
    %v351 = vpop.permute.xlu0 %350
    %353 = vset.pattern.permute.xlu0 2
    %354 = vperm.xlu0 %353, %v24
    %v355 = vpop.permute.xlu0 %354
    %357 = vset.pattern.permute.xlu0 2
    %358 = vperm.xlu0 %357, %v25
    %v359 = vpop.permute.xlu0 %358
    %361 = vset.pattern.permute.xlu0 2
    %362 = vperm.xlu0 %361, %v26
    %v363 = vpop.permute.xlu0 %362
    %365 = vset.pattern.permute.xlu0 2
    %366 = vperm.xlu0 %365, %v27
    %v367 = vpop.permute.xlu0 %366
    %369 = vset.pattern.permute.xlu0 2
    %370 = vperm.xlu0 %369, %v28
    %v371 = vpop.permute.xlu0 %370
    %v373 = vlaneseq
    %v374 = vshrl.u32 %v373, 7
    %v375 = vsub.s32 2, %v374
    %v376 = vrot.slane %v12, %v375
    %v377 = vmul.f32 %v311, %v376
    %v378 = vmul.f32 %v315, %v376
    %v379 = vmul.f32 %v319, %v376
    %v380 = vmul.f32 %v323, %v376
    %v381 = vmul.f32 %v327, %v376
    %v382 = vmul.f32 %v331, %v376
    %v383 = vmul.f32 %v335, %v376
    %v384 = vmul.f32 %v339, %v376
    %v385 = vmul.f32 %v343, %v376
    %v386 = vmul.f32 %v347, %v376
    %v387 = vmul.f32 %v351, %v376
    %v388 = vmul.f32 %v355, %v376
    %v389 = vmul.f32 %v359, %v376
    %v390 = vmul.f32 %v363, %v376
    %v391 = vmul.f32 %v367, %v376
    %v392 = vmul.f32 %v371, %v376
    %v393 = vadd.f32 %v293, %v377
    %v394 = vadd.f32 %v294, %v378
    %v395 = vadd.f32 %v295, %v379
    %v396 = vadd.f32 %v296, %v380
    %v397 = vadd.f32 %v297, %v381
    %v398 = vadd.f32 %v298, %v382
    %v399 = vadd.f32 %v299, %v383
    %v400 = vadd.f32 %v300, %v384
    %v401 = vadd.f32 %v301, %v385
    %v402 = vadd.f32 %v302, %v386
    %v403 = vadd.f32 %v303, %v387
    %v404 = vadd.f32 %v304, %v388
    %v405 = vadd.f32 %v305, %v389
    %v406 = vadd.f32 %v306, %v390
    %v407 = vadd.f32 %v307, %v391
    %v408 = vadd.f32 %v308, %v392
    %409 = vset.pattern.permute.xlu0 3
    %410 = vperm.xlu0 %409, %v13
    %v411 = vpop.permute.xlu0 %410
    %413 = vset.pattern.permute.xlu0 3
    %414 = vperm.xlu0 %413, %v14
    %v415 = vpop.permute.xlu0 %414
    %417 = vset.pattern.permute.xlu0 3
    %418 = vperm.xlu0 %417, %v15
    %v419 = vpop.permute.xlu0 %418
    %421 = vset.pattern.permute.xlu0 3
    %422 = vperm.xlu0 %421, %v16
    %v423 = vpop.permute.xlu0 %422
    %425 = vset.pattern.permute.xlu0 3
    %426 = vperm.xlu0 %425, %v17
    %v427 = vpop.permute.xlu0 %426
    %429 = vset.pattern.permute.xlu0 3
    %430 = vperm.xlu0 %429, %v18
    %v431 = vpop.permute.xlu0 %430
    %433 = vset.pattern.permute.xlu0 3
    %434 = vperm.xlu0 %433, %v19
    %v435 = vpop.permute.xlu0 %434
    %437 = vset.pattern.permute.xlu0 3
    %438 = vperm.xlu0 %437, %v20
    %v439 = vpop.permute.xlu0 %438
    %441 = vset.pattern.permute.xlu0 3
    %442 = vperm.xlu0 %441, %v21
    %v443 = vpop.permute.xlu0 %442
    %445 = vset.pattern.permute.xlu0 3
    %446 = vperm.xlu0 %445, %v22
    %v447 = vpop.permute.xlu0 %446
    %449 = vset.pattern.permute.xlu0 3
    %450 = vperm.xlu0 %449, %v23
    %v451 = vpop.permute.xlu0 %450
    %453 = vset.pattern.permute.xlu0 3
    %454 = vperm.xlu0 %453, %v24
    %v455 = vpop.permute.xlu0 %454
    %457 = vset.pattern.permute.xlu0 3
    %458 = vperm.xlu0 %457, %v25
    %v459 = vpop.permute.xlu0 %458
    %461 = vset.pattern.permute.xlu0 3
    %462 = vperm.xlu0 %461, %v26
    %v463 = vpop.permute.xlu0 %462
    %465 = vset.pattern.permute.xlu0 3
    %466 = vperm.xlu0 %465, %v27
    %v467 = vpop.permute.xlu0 %466
    %469 = vset.pattern.permute.xlu0 3
    %470 = vperm.xlu0 %469, %v28
    %v471 = vpop.permute.xlu0 %470
    %v473 = vlaneseq
    %v474 = vshrl.u32 %v473, 7
    %v475 = vsub.s32 3, %v474
    %v476 = vrot.slane %v12, %v475
    %v477 = vmul.f32 %v411, %v476
    %v478 = vmul.f32 %v415, %v476
    %v479 = vmul.f32 %v419, %v476
    %v480 = vmul.f32 %v423, %v476
    %v481 = vmul.f32 %v427, %v476
    %v482 = vmul.f32 %v431, %v476
    %v483 = vmul.f32 %v435, %v476
    %v484 = vmul.f32 %v439, %v476
    %v485 = vmul.f32 %v443, %v476
    %v486 = vmul.f32 %v447, %v476
    %v487 = vmul.f32 %v451, %v476
    %v488 = vmul.f32 %v455, %v476
    %v489 = vmul.f32 %v459, %v476
    %v490 = vmul.f32 %v463, %v476
    %v491 = vmul.f32 %v467, %v476
    %v492 = vmul.f32 %v471, %v476
    %v493 = vadd.f32 %v393, %v477
    %v494 = vadd.f32 %v394, %v478
    %v495 = vadd.f32 %v395, %v479
    %v496 = vadd.f32 %v396, %v480
    %v497 = vadd.f32 %v397, %v481
    %v498 = vadd.f32 %v398, %v482
    %v499 = vadd.f32 %v399, %v483
    %v500 = vadd.f32 %v400, %v484
    %v501 = vadd.f32 %v401, %v485
    %v502 = vadd.f32 %v402, %v486
    %v503 = vadd.f32 %v403, %v487
    %v504 = vadd.f32 %v404, %v488
    %v505 = vadd.f32 %v405, %v489
    %v506 = vadd.f32 %v406, %v490
    %v507 = vadd.f32 %v407, %v491
    %v508 = vadd.f32 %v408, %v492
    %v509 = vmax.f32 %v493, 0.0
    %v510 = vmax.f32 %v494, 0.0
    %v511 = vmax.f32 %v495, 0.0
    %v512 = vmax.f32 %v496, 0.0
    %v513 = vmax.f32 %v497, 0.0
    %v514 = vmax.f32 %v498, 0.0
    %v515 = vmax.f32 %v499, 0.0
    %v516 = vmax.f32 %v500, 0.0
    %v517 = vmax.f32 %v501, 0.0
    %v518 = vmax.f32 %v502, 0.0
    %v519 = vmax.f32 %v503, 0.0
    %v520 = vmax.f32 %v504, 0.0
    %v521 = vmax.f32 %v505, 0.0
    %v522 = vmax.f32 %v506, 0.0
    %v523 = vmax.f32 %v507, 0.0
    %v524 = vmax.f32 %v508, 0.0
    %525 = vset.pattern.permute.xlu0 5
    %526 = vperm.xlu0 %525, %v13
    %v527 = vpop.permute.xlu0 %526
    %529 = vset.pattern.permute.xlu0 5
    %530 = vperm.xlu0 %529, %v14
    %v531 = vpop.permute.xlu0 %530
    %533 = vset.pattern.permute.xlu0 5
    %534 = vperm.xlu0 %533, %v15
    %v535 = vpop.permute.xlu0 %534
    %537 = vset.pattern.permute.xlu0 5
    %538 = vperm.xlu0 %537, %v16
    %v539 = vpop.permute.xlu0 %538
    %541 = vset.pattern.permute.xlu0 5
    %542 = vperm.xlu0 %541, %v17
    %v543 = vpop.permute.xlu0 %542
    %545 = vset.pattern.permute.xlu0 5
    %546 = vperm.xlu0 %545, %v18
    %v547 = vpop.permute.xlu0 %546
    %549 = vset.pattern.permute.xlu0 5
    %550 = vperm.xlu0 %549, %v19
    %v551 = vpop.permute.xlu0 %550
    %553 = vset.pattern.permute.xlu0 5
    %554 = vperm.xlu0 %553, %v20
    %v555 = vpop.permute.xlu0 %554
    %557 = vset.pattern.permute.xlu0 5
    %558 = vperm.xlu0 %557, %v21
    %v559 = vpop.permute.xlu0 %558
    %561 = vset.pattern.permute.xlu0 5
    %562 = vperm.xlu0 %561, %v22
    %v563 = vpop.permute.xlu0 %562
    %565 = vset.pattern.permute.xlu0 5
    %566 = vperm.xlu0 %565, %v23
    %v567 = vpop.permute.xlu0 %566
    %569 = vset.pattern.permute.xlu0 5
    %570 = vperm.xlu0 %569, %v24
    %v571 = vpop.permute.xlu0 %570
    %573 = vset.pattern.permute.xlu0 5
    %574 = vperm.xlu0 %573, %v25
    %v575 = vpop.permute.xlu0 %574
    %577 = vset.pattern.permute.xlu0 5
    %578 = vperm.xlu0 %577, %v26
    %v579 = vpop.permute.xlu0 %578
    %581 = vset.pattern.permute.xlu0 5
    %582 = vperm.xlu0 %581, %v27
    %v583 = vpop.permute.xlu0 %582
    %585 = vset.pattern.permute.xlu0 5
    %586 = vperm.xlu0 %585, %v28
    %v587 = vpop.permute.xlu0 %586
    %v589 = vmul.f32 %v509, %v527
    %v590 = vmul.f32 %v510, %v531
    %v591 = vmul.f32 %v511, %v535
    %v592 = vmul.f32 %v512, %v539
    %v593 = vmul.f32 %v513, %v543
    %v594 = vmul.f32 %v514, %v547
    %v595 = vmul.f32 %v515, %v551
    %v596 = vmul.f32 %v516, %v555
    %v597 = vmul.f32 %v517, %v559
    %v598 = vmul.f32 %v518, %v563
    %v599 = vmul.f32 %v519, %v567
    %v600 = vmul.f32 %v520, %v571
    %v601 = vmul.f32 %v521, %v575
    %v602 = vmul.f32 %v522, %v579
    %v603 = vmul.f32 %v523, %v583
    %v604 = vmul.f32 %v524, %v587
    %vm605 = vcmask 64512
    %v606 = vsel %vm605, %v589, 0.0
    %v607 = vsel %vm605, %v590, 0.0
    %v608 = vadd.f32 %v606, %v607
    %v609 = vsel %vm605, %v591, 0.0
    %v610 = vadd.f32 %v608, %v609
    %v611 = vsel %vm605, %v592, 0.0
    %v612 = vadd.f32 %v610, %v611
    %v613 = vsel %vm605, %v593, 0.0
    %v614 = vadd.f32 %v612, %v613
    %v615 = vsel %vm605, %v594, 0.0
    %v616 = vadd.f32 %v614, %v615
    %v617 = vsel %vm605, %v595, 0.0
    %v618 = vadd.f32 %v616, %v617
    %v619 = vsel %vm605, %v596, 0.0
    %v620 = vadd.f32 %v618, %v619
    %v621 = vsel %vm605, %v597, 0.0
    %v622 = vadd.f32 %v620, %v621
    %v623 = vsel %vm605, %v598, 0.0
    %v624 = vadd.f32 %v622, %v623
    %v625 = vsel %vm605, %v599, 0.0
    %v626 = vadd.f32 %v624, %v625
    %v627 = vsel %vm605, %v600, 0.0
    %v628 = vadd.f32 %v626, %v627
    %v629 = vsel %vm605, %v601, 0.0
    %v630 = vadd.f32 %v628, %v629
    %v631 = vsel %vm605, %v602, 0.0
    %v632 = vadd.f32 %v630, %v631
    %v633 = vsel %vm605, %v603, 0.0
    %v634 = vadd.f32 %v632, %v633
    %v635 = vsel %vm605, %v604, 0.0
    %v636 = vadd.f32 %v634, %v635
    %v637 = vrot.slane %v636, 4
    %v638 = vadd.f32 %v636, %v637
    %v639 = vrot.slane %v638, 2
    %v640 = vadd.f32 %v638, %v639
    %v641 = vrot.slane %v640, 1
    %v642 = vadd.f32 %v640, %v641
    %643 = vset.pattern.permute.xlu0 6
    %644 = vperm.xlu0 %643, %v13
    %v645 = vpop.permute.xlu0 %644
    %v647 = vadd.f32 %v642, %v645
    %vm648 = vcmask 57344
    %649 = vst.msk [vmem:[#allocation2] sm:$0x1] %vm648, %v647
    // Predicated region
    $region10: #{tpu_custom_call.1} parent=1 // pred_check
      _
    $region11: #{tpu_custom_call.1} parent=1 // pred_check_branch
      %651 = sbr.rel (0) target = $region13
    $region12: #{tpu_custom_call.1} parent=1 // pred_region
      %s653 = ssub.s32 16, 16
      %654 = vsyncadd [#allocation3], %s653
      %s656 = sshll.u32 [#allocation2], 4
      %s657 = int_to_ptr.vmem [resolvable:$true] %s656
      %659 = dma.vmem_to_hbm [thread:$0]  %s657, 16, %s2, [#allocation3]
    $region13: #{tpu_custom_call.1} parent=1 // pred_fallthru
      _
    // Predicated region
    $region14: #{tpu_custom_call.1} parent=1 // pred_check
      _
    $region15: #{tpu_custom_call.1} parent=1 // pred_check_branch
      %661 = sbr.rel (0) target = $region17
    $region16: #{tpu_custom_call.1} parent=1 // pred_region
      %662 = dma.done [#allocation3], 16
    $region17: #{tpu_custom_call.1} parent=1 // pred_fallthru
      _
    %663 = vsyncpa [#allocation3], 1

</llo_original>
